<compile_context>
chip_gen: v7x
topology: tpu7x:2x2x1
jax: 0.10.0
libtpu: 0.0.40
codegen_flags: <defaults>
</compile_context>

<pallas_src>
import functools

import jax
import jax.numpy as jnp
from jax import lax
from jax.experimental import pallas as pl
from jax.experimental.pallas import tpu as pltpu


def _round_up(v, m):
    return (v + m - 1) // m * m


def _onnx_ort_kernel(x_ref, o_ref, *, ncls, ts, conf_nonneg):
    """One (batch, anchor-tile) grid step.

    x_ref block: (1, tn, 5 + ncls) — natural layout, anchors on sublanes, features on
                 lanes: [cx, cy, w, h, conf, cls_0 .. cls_{ncls-1}].
    o_ref block: (1, tn, 6) — [x1, y1, x2, y2, max_score, category(float32)].

    The tile is processed in `ts`-anchor chunks so the live vreg set stays small
    regardless of how large the DMA tile (tn) is.
    """
    tn = x_ref.shape[1]
    nchunk = tn // ts

    def chunk(c, carry):
        s0 = pl.multiple_of(c * ts, ts)
        xb = x_ref[0, pl.ds(s0, ts), :].astype(jnp.float32)        # (ts, 5+ncls)

        cxy = xb[:, 0:2]
        half = xb[:, 2:4] * 0.5
        conf = xb[:, 4:5]
        x1y1 = cxy - half                                          # convert_matrix baked in
        x2y2 = cxy + half

        if ncls == 1:
            # Reference: `scores = conf` for single-class models.
            max_score = conf
            cat_f = jnp.zeros_like(conf)
        else:
            raw = xb[:, 5:]
            # conf_nonneg=True (v7x): max/argmax on raw scores, one multiply at the
            # end.  Exact only for post-sigmoid conf >= 0.
            base = raw if conf_nonneg else raw * conf
            max_base = jnp.max(base, axis=-1, keepdims=True)       # (ts, 1)
            lane = lax.broadcasted_iota(jnp.int32, base.shape, 1).astype(jnp.float32)
            cand = jnp.where(base == max_base, lane, 3.0e38)       # first-max index
            cat_f = jnp.min(cand, axis=-1, keepdims=True)
            max_score = max_base * conf if conf_nonneg else max_base

        out = jnp.concatenate([x1y1, x2y2, max_score, cat_f], axis=-1)   # (ts, 6)
        o_ref[0, pl.ds(s0, ts), :] = out
        return carry

    lax.fori_loop(0, nchunk, chunk, 0)


def onnx_ort_slab(x, *, n_classes=80, anchor_tile=2048, conf_nonneg=False):
    """Packed per-anchor slab (B, N, 6) = [x1, y1, x2, y2, max_score, category]."""
    B, N, C = x.shape
    ncls = n_classes
    assert C == 5 + ncls

    tn = min(_round_up(anchor_tile, 128), _round_up(N, 8))
    # Keep enough parallel grid points to feed both v7x TensorCores.
    while tn > 256 and B * pl.cdiv(N, tn) < 8:
        tn //= 2
    tn = max(8, (tn // 8) * 8)
    ts = 128 if tn % 128 == 0 else tn

    grid = (B, pl.cdiv(N, tn))
    kernel = functools.partial(_onnx_ort_kernel, ncls=ncls, ts=ts,
                               conf_nonneg=conf_nonneg)
    cost = pl.CostEstimate(
        flops=int(B * N * (3 * max(ncls, 1) + 10)),
        transcendentals=0,
        bytes_accessed=int(x.size * x.dtype.itemsize + B * N * 6 * 4))

    # TODO(synk): if the upstream producer can emit bf16 class scores as a separate
    # tensor, add a second bf16 input to roughly halve HBM read traffic on v5e/v6e
    # (splitting here in the wrapper would just re-add the relayout copy we removed).
    return pl.pallas_call(
        kernel,
        out_shape=jax.ShapeDtypeStruct((B, N, 6), jnp.float32),
        grid_spec=pltpu.PrefetchScalarGridSpec(
            num_scalar_prefetch=0,
            grid=grid,
            in_specs=[pl.BlockSpec((1, tn, C), lambda b, n: (b, n, 0))],
            out_specs=pl.BlockSpec((1, tn, 6), lambda b, n: (b, n, 0)),
        ),
        compiler_params=pltpu.CompilerParams(
            dimension_semantics=("parallel", "parallel")),
        cost_estimate=cost,
    )(x)


def onnx_ort_dense(x, *, n_classes=80, anchor_tile=2048, conf_nonneg=False):
    """Dense outputs for inspection/testing: boxes (B,N,4), max_score (B,N), category (B,N)."""
    slab = onnx_ort_slab(x, n_classes=n_classes, anchor_tile=anchor_tile,
                         conf_nonneg=conf_nonneg)
    return slab[..., 0:4], slab[..., 4], slab[..., 5]


def onnx_ort_forward(x, nms_key, *, max_obj=100, iou_thres=0.45, score_thres=0.25,
                     max_wh=640.0, n_classes=80, anchor_tile=2048, conf_nonneg=False):
    """JAX/Pallas equivalent of ONNX_ORT.forward."""
    B, N, _ = x.shape
    slab = onnx_ort_slab(x, n_classes=n_classes, anchor_tile=anchor_tile,
                         conf_nonneg=conf_nonneg)

    # nmsbox = boxes + category * max_wh feeds only the ORT_NMS export stub, which
    # ignores its inputs and returns random indices — dead in this path.
    # TODO(synk): compute nmsbox and run a real NMS if the random ONNX export stub is
    # ever replaced by an actual NonMaxSuppression implementation.
    del max_obj, iou_thres, score_thres, max_wh

    # ORT_NMS stub reproduced deterministically from `nms_key` (the reference uses
    # Python `random` + torch.randint).  Host-side, not jittable.
    kd, kb = jax.random.split(nms_key)
    max_det = max(0, min(100, N - 100))     # keep anchor ids 100..100+num_det-1 in range
    num_det = int(jax.random.randint(kd, (), 0, max_det + 1))
    X = jnp.sort(jax.random.randint(kb, (num_det,), 0, B, dtype=jnp.int32))
    Y = jnp.arange(100, 100 + num_det, dtype=jnp.int32)

    sel = slab[X, Y, :]                     # (num_det, 6), gathered straight from the slab
    Xf = X[:, None].astype(jnp.float32)
    # columns: [batch, x1, y1, x2, y2, category, score]
    return jnp.concatenate([Xf, sel[:, 0:4], sel[:, 5:6], sel[:, 4:5]], axis=1)


if __name__ == "__main__":
    key = jax.random.PRNGKey(0)
    kx, knms, k1 = jax.random.split(key, 3)

    # ---- multi-class path ---------------------------------------------------
    B, N, NC = 2, 384, 80
    x = jax.random.uniform(kx, (B, N, 5 + NC), dtype=jnp.float32)

    boxes, max_score, category = onnx_ort_dense(x, n_classes=NC)
    jax.block_until_ready(boxes)

    # Pure-JAX reference for the in-kernel hot path.
    cm = jnp.array([[1., 0., 1., 0.],
                    [0., 1., 0., 1.],
                    [-0.5, 0., 0.5, 0.],
                    [0., -0.5, 0., 0.5]], dtype=jnp.float32)
    boxes_ref = x[..., :4] @ cm
    scores_ref = x[..., 5:] * x[..., 4:5]
    ms_ref = jnp.max(scores_ref, axis=-1)
    cat_ref = jnp.argmax(scores_ref, axis=-1).astype(jnp.float32)

    assert jnp.allclose(boxes, boxes_ref, atol=1e-5, rtol=1e-5)
    assert jnp.allclose(max_score, ms_ref, atol=1e-6, rtol=1e-6)
    assert bool(jnp.all(category == cat_ref))

    # ---- single-class path (reference: scores = conf) -----------------------
    x1 = jax.random.uniform(k1, (2, 256, 6), dtype=jnp.float32)
    b1, s1, c1 = onnx_ort_dense(x1, n_classes=1)
    jax.block_until_ready(b1)
    assert jnp.allclose(b1, x1[..., :4] @ cm, atol=1e-5, rtol=1e-5)
    assert jnp.allclose(s1, x1[..., 4], atol=1e-6)
    assert bool(jnp.all(c1 == 0.0))

    # ---- full forward (ORT_NMS stub) ----------------------------------------
    out = onnx_ort_forward(x, knms, n_classes=NC)
    jax.block_until_ready(out)
    assert out.ndim == 2 and out.shape[1] == 7
    print("KERNEL_OK")
</pallas_src>

<mosaic_0001>
module attributes {stable_mosaic.version = 11 : i64} {
  func.func @_onnx_ort_kernel(%arg0: i32, %arg1: i32, %arg2: memref<1x192x85xf32, #tpu.memory_space<vmem>>, %arg3: memref<1x192x6xf32, #tpu.memory_space<vmem>>) attributes {dimension_semantics = [#tpu.dimension_semantics<parallel>, #tpu.dimension_semantics<parallel>], iteration_bounds = array<i64: 2, 2>, scalar_prefetch = 0 : i64, scratch_operands = 0 : i64, tpu.core_type = #tpu.core_type<tc>, window_params = [{transform_indices = @transform_0, window_bounds = array<i64: 1, 192, 85>}, {transform_indices = @transform_1, window_bounds = array<i64: 1, 192, 6>}]} {
    %c0_i32 = arith.constant 0 : i32
    %c192_i32 = arith.constant 192 : i32
    %0 = arith.muli %c0_i32, %c192_i32 : i32
    %1 = tpu.assume_multiple %0, 192 : i32
    %c0 = arith.constant 0 : index
    %2 = arith.index_cast %1 : i32 to index
    %c0_0 = arith.constant 0 : index
    %3 = vector.load %arg2[%c0, %2, %c0_0] : memref<1x192x85xf32, #tpu.memory_space<vmem>>, vector<1x192x85xf32>
    %4 = vector.shape_cast %3 : vector<1x192x85xf32> to vector<192x85xf32>
    %5 = vector.extract_strided_slice %4 {offsets = [0, 0], sizes = [192, 2], strides = [1, 1]} : vector<192x85xf32> to vector<192x2xf32>
    %6 = vector.extract_strided_slice %4 {offsets = [0, 2], sizes = [192, 2], strides = [1, 1]} : vector<192x85xf32> to vector<192x2xf32>
    %cst = arith.constant 5.000000e-01 : f32
    %7 = vector.broadcast %cst : f32 to vector<192x2xf32>
    %8 = arith.mulf %6, %7 : vector<192x2xf32>
    %9 = vector.extract_strided_slice %4 {offsets = [0, 4], sizes = [192, 1], strides = [1, 1]} : vector<192x85xf32> to vector<192x1xf32>
    %10 = arith.subf %5, %8 : vector<192x2xf32>
    %11 = arith.addf %5, %8 : vector<192x2xf32>
    %12 = vector.extract_strided_slice %4 {offsets = [0, 5], sizes = [192, 80], strides = [1, 1]} : vector<192x85xf32> to vector<192x80xf32>
    %13 = vector.broadcast %9 : vector<192x1xf32> to vector<192x80xf32>
    %14 = arith.mulf %12, %13 : vector<192x80xf32>
    %cst_1 = arith.constant dense<0xFF800000> : vector<192xf32>
    %15 = vector.multi_reduction <maximumf>, %14, %cst_1 [1] : vector<192x80xf32> to vector<192xf32>
    %16 = vector.shape_cast %15 : vector<192xf32> to vector<192x1xf32>
    %17 = tpu.iota {dimensions = array<i32: 1>} : vector<192x80xi32>
    %18 = arith.sitofp %17 : vector<192x80xi32> to vector<192x80xf32>
    %19 = vector.broadcast %16 : vector<192x1xf32> to vector<192x80xf32>
    %20 = arith.cmpf oeq, %14, %19 : vector<192x80xf32>
    %cst_2 = arith.constant 3.000000e+38 : f32
    %21 = vector.broadcast %cst_2 : f32 to vector<192x80xf32>
    %22 = arith.select %20, %18, %21 : vector<192x80xi1>, vector<192x80xf32>
    %cst_3 = arith.constant dense<0x7F800000> : vector<192xf32>
    %23 = vector.multi_reduction <minimumf>, %22, %cst_3 [1] : vector<192x80xf32> to vector<192xf32>
    %24 = vector.shape_cast %23 : vector<192xf32> to vector<192x1xf32>
    %25 = tpu.concatenate %10, %11, %16, %24 in 1 : vector<192x2xf32>, vector<192x2xf32>, vector<192x1xf32>, vector<192x1xf32> -> vector<192x6xf32>
    %c0_4 = arith.constant 0 : index
    %26 = arith.index_cast %1 : i32 to index
    %c0_5 = arith.constant 0 : index
    %27 = vector.load %arg3[%c0_4, %26, %c0_5] : memref<1x192x6xf32, #tpu.memory_space<vmem>>, vector<1x192x6xf32>
    %28 = vector.shape_cast %27 : vector<1x192x6xf32> to vector<192x6xf32>
    %29 = vector.shape_cast %25 : vector<192x6xf32> to vector<1x192x6xf32>
    tpu.vector_store %arg3[%c0_4, %26, %c0_5], %29 {strides = array<i32>} : memref<1x192x6xf32, #tpu.memory_space<vmem>>, vector<1x192x6xf32>,
    %c1_i32 = arith.constant 1 : i32
    return
  }
  func.func @transform_0(%arg0: i32, %arg1: i32) -> (i32, i32, i32) {
    %c0_i32 = arith.constant 0 : i32
    %c0_i32_0 = arith.constant 0 : i32
    return %arg0, %arg1, %c0_i32 : i32, i32, i32
  }
  func.func @transform_1(%arg0: i32, %arg1: i32) -> (i32, i32, i32) {
    %c0_i32 = arith.constant 0 : i32
    %c0_i32_0 = arith.constant 0 : i32
    return %arg0, %arg1, %c0_i32 : i32, i32, i32
  }
}

</mosaic_0001>

<llo_original>
// kernel: tpu_custom_call.1
$region0: #{tpu_custom_call.1}
  #allocation0 [shape = 'u32[]', space=smem, size = 0x4, offset = 0x4, fixed_abs, tag = 'smem constant byte address 0x4 - core index']
  #allocation1 [shape = 'u32[144,128]{1,0:T(1,128)}', space=vmem, size = 0x12000, scoped, tag = 'internal scratch']
  %s0 = inlined_call_operand.vmem [shape: f32[2,384,85], index: 0, kind: input, shape index: {}]
  %s1 = inlined_call_operand.vmem [shape: f32[2,384,6], index: 1, kind: output, shape index: {}]
  %s2 = sld [smem:[#allocation0]]
  $region37: #{tpu_custom_call.1} parent=0
    _
  %s4 = ssub.s32 1, %s2
  %s5 = scalar_select 0, %s4, %s2
  loop: start=0, step=1, limit=6
  $region2: #{tpu_custom_call.1} parent=0 // loop_pre_header
    _
  $region3: #{tpu_custom_call.1} parent=0 // loop_header
    %s7 = sphi 0, %s11
    %p8 = scmp.ge.s32.totalorder %s7, 6
    %s14 = sphi 0, %s26
    %s15 = sphi 0, %s22
    %s16 = sphi 0, %s14
    %s17 = sphi 0, %s15
    %s18 = sphi 0, %s16
    %s19 = sphi 0, %s17
    %s31 = sphi 0, %s33
    %s34 = sphi 0, %s31
    %s35 = sphi 0, %s34
    %s51 = sphi 0, %s35
    %s59 = sphi 0, %s61
    %s62 = sphi 0, %s59
    %s63 = sphi 0, %s62
    %s79 = sphi 0, %s63
  $region4: #{tpu_custom_call.1} parent=0 // loop_header_branch
    %10 = sbr.rel (%p8) target = $region8
  $region5: #{tpu_custom_call.1} parent=0 // loop_body
    %s12 = ssub.s32 %s7, 1
    %s13 = ssub.s32 %s7, 2
    %s20 = sadd.s32 1, %s15
    %p21 = scmp.ge.s32.totalorder %s20, 2
    %s22 = scalar_select %p21, 0, %s20
    %s23 = sadd.s32 1, %s14
    %s24 = scalar_select %p21, %s23, %s14
    %p25 = scmp.ge.s32.totalorder %s24, 2
    %s26 = scalar_select %p25, 0, %s24
    %s27 = ssub.s32 %s14, %s26
    %s28 = ssub.s32 %s15, %s22
    %s29 = sor.u32 %s27, %s28
    %p30 = scmp.eq.s32.totalorder %s29, 0
    %s32 = sadd.s32 %s31, 1
    %s33 = scalar_select %p30, %s31, %s32
    %p36 = pneg %p30
    %p37 = scmp.eq.s32.totalorder %s7, 3
    %p38 = por %p36, %p37
    %p39 = scmp.ne.s32.totalorder %s31, %s34
    %p40 = scmp.eq.s32.totalorder %s7, 0
    %p41 = por %p39, %p40
    %p42 = scmp.ne.s32.totalorder %s31, %s34
    %p43 = scmp.eq.s32.totalorder %s12, 3
    %p44 = por %p42, %p43
    %p45 = scmp.ne.s32.totalorder %s34, %s35
    %p46 = scmp.eq.s32.totalorder %s12, 0
    %p47 = por %p45, %p46
    %p48 = scmp.ne.s32.totalorder %s34, %s35
    %p49 = scmp.eq.s32.totalorder %s13, 3
    %p50 = por %p48, %p49
    %p52 = scmp.ne.s32.totalorder %s35, %s51
    %p53 = scmp.eq.s32.totalorder %s13, 0
    %p54 = por %p52, %p53
    %s55 = ssub.s32 %s14, %s26
    %s56 = ssub.s32 %s15, %s22
    %s57 = sor.u32 %s55, %s56
    %p58 = scmp.eq.s32.totalorder %s57, 0
    %s60 = sadd.s32 %s59, 1
    %s61 = scalar_select %p58, %s59, %s60
    %p64 = pneg %p58
    %p65 = scmp.eq.s32.totalorder %s7, 3
    %p66 = por %p64, %p65
    %p67 = scmp.ne.s32.totalorder %s59, %s62
    %p68 = scmp.eq.s32.totalorder %s7, 0
    %p69 = por %p67, %p68
    %p70 = scmp.ne.s32.totalorder %s59, %s62
    %p71 = scmp.eq.s32.totalorder %s12, 3
    %p72 = por %p70, %p71
    %p73 = scmp.ne.s32.totalorder %s62, %s63
    %p74 = scmp.eq.s32.totalorder %s12, 0
    %p75 = por %p73, %p74
    %p76 = scmp.ne.s32.totalorder %s62, %s63
    %p77 = scmp.eq.s32.totalorder %s13, 3
    %p78 = por %p76, %p77
    %p80 = scmp.ne.s32.totalorder %s63, %s79
    %p81 = scmp.eq.s32.totalorder %s13, 0
    %p82 = por %p80, %p81
    %p83 = scmp.le.s32.totalorder 1, %s7
    %p84 = scmp.lt.s32.totalorder %s7, 5
    %p85 = pnand %p83, %p84
    %p86 = pneg %p85
    // Predicated region
    $region9: #{tpu_custom_call.1} parent=5 // pred_check
      _
    $region10: #{tpu_custom_call.1} parent=5 // pred_check_branch
      %88 = sbr.rel (%p85) target = $region12
    $region11: #{tpu_custom_call.1} parent=5 // pred_region
      %s89 = ssub.s32 %s7, 1
    $region12: #{tpu_custom_call.1} parent=5 // pred_fallthru
      _
    %p90 = scmp.lt.s32.totalorder %s7, 4
    // Predicated region
    $region13: #{tpu_custom_call.1} parent=5 // pred_check
      %p91 = pneg %p90
    $region14: #{tpu_custom_call.1} parent=5 // pred_check_branch
      %93 = sbr.rel (%p91) target = $region16
    $region15: #{tpu_custom_call.1} parent=5 // pred_region
      // Predicated region
      $region17: #{tpu_custom_call.1} parent=15 // pred_check
        %p94 = pneg %p41
      $region18: #{tpu_custom_call.1} parent=15 // pred_check_branch
        %96 = sbr.rel (%p94) target = $region20
      $region19: #{tpu_custom_call.1} parent=15 // pred_region
        %s97 = smul.u32 24, %s15
        %p98 = scmp.lt.s32.totalorder %s14, 1
        %s99 = scalar_select %p98, %s14, 1
        %p100 = scmp.lt.s32.totalorder %s97, 47
        %s101 = scalar_select %p100, %s97, 47
        %s102 = smul.addr %s99, 48
        %s103 = sadd.s32 %s101, %s102
        %s104 = smul.addr %s103, 8
        %s105 = scalar_lea.vmem %s0, %s104
        %s106 = smul.u32 24, %s15
      $region20: #{tpu_custom_call.1} parent=15 // pred_fallthru
        _
    $region16: #{tpu_custom_call.1} parent=5 // pred_fallthru
      _
    %p107 = scmp.le.s32.totalorder 1, %s7
    %p108 = scmp.lt.s32.totalorder %s7, 5
    %p109 = pnand %p107, %p108
    %p110 = pneg %p109
    // Predicated region
    $region21: #{tpu_custom_call.1} parent=5 // pred_check
      _
    $region22: #{tpu_custom_call.1} parent=5 // pred_check_branch
      %112 = sbr.rel (%p109) target = $region24
    $region23: #{tpu_custom_call.1} parent=5 // pred_region
      %s113 = ssub.s32 %s7, 1
      %s114 = smul.u32 24, %s17
      %p115 = scmp.lt.s32.totalorder %s16, 1
      %s116 = scalar_select %p115, %s16, 1
      %p117 = scmp.lt.s32.totalorder %s114, 47
      %s118 = scalar_select %p117, %s114, 47
      %s119 = smul.addr %s116, 48
      %s120 = sadd.s32 %s118, %s119
      %s121 = smul.addr %s120, 8
      %s122 = scalar_lea.vmem %s0, %s121
      %p123 = pneg %p47
      %p124 = pneg %p44
      %p125 = pneg %p75
      %p126 = pneg %p72
      %s127 = smul.u32 24, %s17
      %p128 = scmp.lt.s32.totalorder %s16, 1
      %s129 = scalar_select %p128, %s16, 1
      %p130 = scmp.lt.s32.totalorder %s127, 47
      %s131 = scalar_select %p130, %s127, 47
      %s132 = smul.addr %s129, 48
      %s133 = sadd.s32 %s131, %s132
      %s134 = smul.addr %s133, 8
      %s135 = scalar_lea.vmem %s1, %s134
      %s136 = smul.u32 24, %s17
      %p137 = scmp.lt.s32.totalorder %s16, 1
      %s138 = scalar_select %p137, %s16, 1
      %p139 = scmp.lt.s32.totalorder %s136, 47
      %s140 = scalar_select %p139, %s136, 47
      %s141 = smul.addr %s138, 48
      %s142 = sadd.s32 %s140, %s141
      %s143 = smul.addr %s142, 8
      %s144 = scalar_lea.vmem %s0, %s143
      %s145 = smul.u32 24, %s17
      %s146 = smul.u32 24, %s17
      %p147 = scmp.lt.s32.totalorder %s16, 1
      %s148 = scalar_select %p147, %s16, 1
      %p149 = scmp.lt.s32.totalorder %s146, 47
      %s150 = scalar_select %p149, %s146, 47
      %s151 = smul.addr %s148, 48
      %s152 = sadd.s32 %s150, %s151
      %s153 = smul.addr %s152, 8
      %s154 = scalar_lea.vmem %s1, %s153
      %s155 = smul.u32 24, %s17
      %v156 = vld [vmem:[%s144] sm:$0xff]
      %v157 = vld [vmem:[%s144 + $0x8] sm:$0xff]
      %v158 = vld [vmem:[%s144 + $0x10] sm:$0xff]
      %v159 = vld [vmem:[%s144 + $0x18] sm:$0xff]
      %v160 = vld [vmem:[%s144 + $0x20] sm:$0xff]
      %v161 = vld [vmem:[%s144 + $0x28] sm:$0xff]
      %v162 = vld [vmem:[%s144 + $0x30] sm:$0xff]
      %v163 = vld [vmem:[%s144 + $0x38] sm:$0xff]
      %v164 = vld [vmem:[%s144 + $0x40] sm:$0xff]
      %v165 = vld [vmem:[%s144 + $0x48] sm:$0xff]
      %v166 = vld [vmem:[%s144 + $0x50] sm:$0xff]
      %v167 = vld [vmem:[%s144 + $0x58] sm:$0xff]
      %v168 = vld [vmem:[%s144 + $0x60] sm:$0xff]
      %v169 = vld [vmem:[%s144 + $0x68] sm:$0xff]
      %v170 = vld [vmem:[%s144 + $0x70] sm:$0xff]
      %v171 = vld [vmem:[%s144 + $0x78] sm:$0xff]
      %v172 = vld [vmem:[%s144 + $0x80] sm:$0xff]
      %v173 = vld [vmem:[%s144 + $0x88] sm:$0xff]
      %v174 = vld [vmem:[%s144 + $0x90] sm:$0xff]
      %v175 = vld [vmem:[%s144 + $0x98] sm:$0xff]
      %v176 = vld [vmem:[%s144 + $0xa0] sm:$0xff]
      %v177 = vld [vmem:[%s144 + $0xa8] sm:$0xff]
      %v178 = vld [vmem:[%s144 + $0xb0] sm:$0xff]
      %v179 = vld [vmem:[%s144 + $0xb8] sm:$0xff]
      %v180 = vmul.f32 %v156, 0.5
      %v181 = vmul.f32 %v157, 0.5
      %v182 = vmul.f32 %v158, 0.5
      %v183 = vmul.f32 %v159, 0.5
      %v184 = vmul.f32 %v160, 0.5
      %v185 = vmul.f32 %v161, 0.5
      %v186 = vmul.f32 %v162, 0.5
      %v187 = vmul.f32 %v163, 0.5
      %v188 = vmul.f32 %v164, 0.5
      %v189 = vmul.f32 %v165, 0.5
      %v190 = vmul.f32 %v166, 0.5
      %v191 = vmul.f32 %v167, 0.5
      %v192 = vmul.f32 %v168, 0.5
      %v193 = vmul.f32 %v169, 0.5
      %v194 = vmul.f32 %v170, 0.5
      %v195 = vmul.f32 %v171, 0.5
      %v196 = vmul.f32 %v172, 0.5
      %v197 = vmul.f32 %v173, 0.5
      %v198 = vmul.f32 %v174, 0.5
      %v199 = vmul.f32 %v175, 0.5
      %v200 = vmul.f32 %v176, 0.5
      %v201 = vmul.f32 %v177, 0.5
      %v202 = vmul.f32 %v178, 0.5
      %v203 = vmul.f32 %v179, 0.5
      %228 = vrot.lane.b32.xlu0 %v180, 126
      %v229 = vpop.permute.xlu0 %228
      %230 = vrot.lane.b32.xlu0 %v181, 126
      %v231 = vpop.permute.xlu0 %230
      %232 = vrot.lane.b32.xlu0 %v182, 126
      %v233 = vpop.permute.xlu0 %232
      %234 = vrot.lane.b32.xlu0 %v183, 126
      %v235 = vpop.permute.xlu0 %234
      %236 = vrot.lane.b32.xlu0 %v184, 126
      %v237 = vpop.permute.xlu0 %236
      %238 = vrot.lane.b32.xlu0 %v185, 126
      %v239 = vpop.permute.xlu0 %238
      %240 = vrot.lane.b32.xlu0 %v186, 126
      %v241 = vpop.permute.xlu0 %240
      %242 = vrot.lane.b32.xlu0 %v187, 126
      %v243 = vpop.permute.xlu0 %242
      %244 = vrot.lane.b32.xlu0 %v188, 126
      %v245 = vpop.permute.xlu0 %244
      %246 = vrot.lane.b32.xlu0 %v189, 126
      %v247 = vpop.permute.xlu0 %246
      %248 = vrot.lane.b32.xlu0 %v190, 126
      %v249 = vpop.permute.xlu0 %248
      %250 = vrot.lane.b32.xlu0 %v191, 126
      %v251 = vpop.permute.xlu0 %250
      %252 = vrot.lane.b32.xlu0 %v192, 126
      %v253 = vpop.permute.xlu0 %252
      %254 = vrot.lane.b32.xlu0 %v193, 126
      %v255 = vpop.permute.xlu0 %254
      %256 = vrot.lane.b32.xlu0 %v194, 126
      %v257 = vpop.permute.xlu0 %256
      %258 = vrot.lane.b32.xlu0 %v195, 126
      %v259 = vpop.permute.xlu0 %258
      %260 = vrot.lane.b32.xlu0 %v196, 126
      %v261 = vpop.permute.xlu0 %260
      %262 = vrot.lane.b32.xlu0 %v197, 126
      %v263 = vpop.permute.xlu0 %262
      %264 = vrot.lane.b32.xlu0 %v198, 126
      %v265 = vpop.permute.xlu0 %264
      %266 = vrot.lane.b32.xlu0 %v199, 126
      %v267 = vpop.permute.xlu0 %266
      %268 = vrot.lane.b32.xlu0 %v200, 126
      %v269 = vpop.permute.xlu0 %268
      %270 = vrot.lane.b32.xlu0 %v201, 126
      %v271 = vpop.permute.xlu0 %270
      %272 = vrot.lane.b32.xlu0 %v202, 126
      %v273 = vpop.permute.xlu0 %272
      %274 = vrot.lane.b32.xlu0 %v203, 126
      %v275 = vpop.permute.xlu0 %274
      %v300 = vsub.f32 %v156, %v229
      %v301 = vsub.f32 %v157, %v231
      %v302 = vsub.f32 %v158, %v233
      %v303 = vsub.f32 %v159, %v235
      %v304 = vsub.f32 %v160, %v237
      %v305 = vsub.f32 %v161, %v239
      %v306 = vsub.f32 %v162, %v241
      %v307 = vsub.f32 %v163, %v243
      %v308 = vsub.f32 %v164, %v245
      %v309 = vsub.f32 %v165, %v247
      %v310 = vsub.f32 %v166, %v249
      %v311 = vsub.f32 %v167, %v251
      %v312 = vsub.f32 %v168, %v253
      %v313 = vsub.f32 %v169, %v255
      %v314 = vsub.f32 %v170, %v257
      %v315 = vsub.f32 %v171, %v259
      %v316 = vsub.f32 %v172, %v261
      %v317 = vsub.f32 %v173, %v263
      %v318 = vsub.f32 %v174, %v265
      %v319 = vsub.f32 %v175, %v267
      %v320 = vsub.f32 %v176, %v269
      %v321 = vsub.f32 %v177, %v271
      %v322 = vsub.f32 %v178, %v273
      %v323 = vsub.f32 %v179, %v275
      %v324 = vadd.f32 %v156, %v229
      %v325 = vadd.f32 %v157, %v231
      %v326 = vadd.f32 %v158, %v233
      %v327 = vadd.f32 %v159, %v235
      %v328 = vadd.f32 %v160, %v237
      %v329 = vadd.f32 %v161, %v239
      %v330 = vadd.f32 %v162, %v241
      %v331 = vadd.f32 %v163, %v243
      %v332 = vadd.f32 %v164, %v245
      %v333 = vadd.f32 %v165, %v247
      %v334 = vadd.f32 %v166, %v249
      %v335 = vadd.f32 %v167, %v251
      %v336 = vadd.f32 %v168, %v253
      %v337 = vadd.f32 %v169, %v255
      %v338 = vadd.f32 %v170, %v257
      %v339 = vadd.f32 %v171, %v259
      %v340 = vadd.f32 %v172, %v261
      %v341 = vadd.f32 %v173, %v263
      %v342 = vadd.f32 %v174, %v265
      %v343 = vadd.f32 %v175, %v267
      %v344 = vadd.f32 %v176, %v269
      %v345 = vadd.f32 %v177, %v271
      %v346 = vadd.f32 %v178, %v273
      %v347 = vadd.f32 %v179, %v275
      %349 = vset.pattern.permute.xlu0 4
      %350 = vperm.xlu0 %349, %v156
      %v351 = vpop.permute.xlu0 %350
      %354 = vset.pattern.permute.xlu0 4
      %355 = vperm.xlu0 %354, %v157
      %v356 = vpop.permute.xlu0 %355
      %359 = vset.pattern.permute.xlu0 4
      %360 = vperm.xlu0 %359, %v158
      %v361 = vpop.permute.xlu0 %360
      %364 = vset.pattern.permute.xlu0 4
      %365 = vperm.xlu0 %364, %v159
      %v366 = vpop.permute.xlu0 %365
      %369 = vset.pattern.permute.xlu0 4
      %370 = vperm.xlu0 %369, %v160
      %v371 = vpop.permute.xlu0 %370
      %374 = vset.pattern.permute.xlu0 4
      %375 = vperm.xlu0 %374, %v161
      %v376 = vpop.permute.xlu0 %375
      %379 = vset.pattern.permute.xlu0 4
      %380 = vperm.xlu0 %379, %v162
      %v381 = vpop.permute.xlu0 %380
      %384 = vset.pattern.permute.xlu0 4
      %385 = vperm.xlu0 %384, %v163
      %v386 = vpop.permute.xlu0 %385
      %389 = vset.pattern.permute.xlu0 4
      %390 = vperm.xlu0 %389, %v164
      %v391 = vpop.permute.xlu0 %390
      %394 = vset.pattern.permute.xlu0 4
      %395 = vperm.xlu0 %394, %v165
      %v396 = vpop.permute.xlu0 %395
      %399 = vset.pattern.permute.xlu0 4
      %400 = vperm.xlu0 %399, %v166
      %v401 = vpop.permute.xlu0 %400
      %404 = vset.pattern.permute.xlu0 4
      %405 = vperm.xlu0 %404, %v167
      %v406 = vpop.permute.xlu0 %405
      %409 = vset.pattern.permute.xlu0 4
      %410 = vperm.xlu0 %409, %v168
      %v411 = vpop.permute.xlu0 %410
      %414 = vset.pattern.permute.xlu0 4
      %415 = vperm.xlu0 %414, %v169
      %v416 = vpop.permute.xlu0 %415
      %419 = vset.pattern.permute.xlu0 4
      %420 = vperm.xlu0 %419, %v170
      %v421 = vpop.permute.xlu0 %420
      %424 = vset.pattern.permute.xlu0 4
      %425 = vperm.xlu0 %424, %v171
      %v426 = vpop.permute.xlu0 %425
      %429 = vset.pattern.permute.xlu0 4
      %430 = vperm.xlu0 %429, %v172
      %v431 = vpop.permute.xlu0 %430
      %434 = vset.pattern.permute.xlu0 4
      %435 = vperm.xlu0 %434, %v173
      %v436 = vpop.permute.xlu0 %435
      %439 = vset.pattern.permute.xlu0 4
      %440 = vperm.xlu0 %439, %v174
      %v441 = vpop.permute.xlu0 %440
      %444 = vset.pattern.permute.xlu0 4
      %445 = vperm.xlu0 %444, %v175
      %v446 = vpop.permute.xlu0 %445
      %449 = vset.pattern.permute.xlu0 4
      %450 = vperm.xlu0 %449, %v176
      %v451 = vpop.permute.xlu0 %450
      %454 = vset.pattern.permute.xlu0 4
      %455 = vperm.xlu0 %454, %v177
      %v456 = vpop.permute.xlu0 %455
      %459 = vset.pattern.permute.xlu0 4
      %460 = vperm.xlu0 %459, %v178
      %v461 = vpop.permute.xlu0 %460
      %464 = vset.pattern.permute.xlu0 4
      %465 = vperm.xlu0 %464, %v179
      %v466 = vpop.permute.xlu0 %465
      %v468 = vmul.f32 %v156, %v351
      %v469 = vmul.f32 %v157, %v356
      %v470 = vmul.f32 %v158, %v361
      %v471 = vmul.f32 %v159, %v366
      %v472 = vmul.f32 %v160, %v371
      %v473 = vmul.f32 %v161, %v376
      %v474 = vmul.f32 %v162, %v381
      %v475 = vmul.f32 %v163, %v386
      %v476 = vmul.f32 %v164, %v391
      %v477 = vmul.f32 %v165, %v396
      %v478 = vmul.f32 %v166, %v401
      %v479 = vmul.f32 %v167, %v406
      %v480 = vmul.f32 %v168, %v411
      %v481 = vmul.f32 %v169, %v416
      %v482 = vmul.f32 %v170, %v421
      %v483 = vmul.f32 %v171, %v426
      %v484 = vmul.f32 %v172, %v431
      %v485 = vmul.f32 %v173, %v436
      %v486 = vmul.f32 %v174, %v441
      %v487 = vmul.f32 %v175, %v446
      %v488 = vmul.f32 %v176, %v451
      %v489 = vmul.f32 %v177, %v456
      %v490 = vmul.f32 %v178, %v461
      %v491 = vmul.f32 %v179, %v466
      %vm492 = vcmask 695336
      %v493 = vsel %vm492, %v468, -inf
      %494 = vmax.xlane.f32.xlu0 %v493
      %v495 = vpop.xlane.xlu0 %494
      %v496 = vsel %vm492, %v469, -inf
      %497 = vmax.xlane.f32.xlu0 %v496
      %v498 = vpop.xlane.xlu0 %497
      %v499 = vsel %vm492, %v470, -inf
      %500 = vmax.xlane.f32.xlu0 %v499
      %v501 = vpop.xlane.xlu0 %500
      %v502 = vsel %vm492, %v471, -inf
      %503 = vmax.xlane.f32.xlu0 %v502
      %v504 = vpop.xlane.xlu0 %503
      %v505 = vsel %vm492, %v472, -inf
      %506 = vmax.xlane.f32.xlu0 %v505
      %v507 = vpop.xlane.xlu0 %506
      %v508 = vsel %vm492, %v473, -inf
      %509 = vmax.xlane.f32.xlu0 %v508
      %v510 = vpop.xlane.xlu0 %509
      %v511 = vsel %vm492, %v474, -inf
      %512 = vmax.xlane.f32.xlu0 %v511
      %v513 = vpop.xlane.xlu0 %512
      %v514 = vsel %vm492, %v475, -inf
      %515 = vmax.xlane.f32.xlu0 %v514
      %v516 = vpop.xlane.xlu0 %515
      %v517 = vsel %vm492, %v476, -inf
      %518 = vmax.xlane.f32.xlu0 %v517
      %v519 = vpop.xlane.xlu0 %518
      %v520 = vsel %vm492, %v477, -inf
      %521 = vmax.xlane.f32.xlu0 %v520
      %v522 = vpop.xlane.xlu0 %521
      %v523 = vsel %vm492, %v478, -inf
      %524 = vmax.xlane.f32.xlu0 %v523
      %v525 = vpop.xlane.xlu0 %524
      %v526 = vsel %vm492, %v479, -inf
      %527 = vmax.xlane.f32.xlu0 %v526
      %v528 = vpop.xlane.xlu0 %527
      %v529 = vsel %vm492, %v480, -inf
      %530 = vmax.xlane.f32.xlu0 %v529
      %v531 = vpop.xlane.xlu0 %530
      %v532 = vsel %vm492, %v481, -inf
      %533 = vmax.xlane.f32.xlu0 %v532
      %v534 = vpop.xlane.xlu0 %533
      %v535 = vsel %vm492, %v482, -inf
      %536 = vmax.xlane.f32.xlu0 %v535
      %v537 = vpop.xlane.xlu0 %536
      %v538 = vsel %vm492, %v483, -inf
      %539 = vmax.xlane.f32.xlu0 %v538
      %v540 = vpop.xlane.xlu0 %539
      %v541 = vsel %vm492, %v484, -inf
      %542 = vmax.xlane.f32.xlu0 %v541
      %v543 = vpop.xlane.xlu0 %542
      %v544 = vsel %vm492, %v485, -inf
      %545 = vmax.xlane.f32.xlu0 %v544
      %v546 = vpop.xlane.xlu0 %545
      %v547 = vsel %vm492, %v486, -inf
      %548 = vmax.xlane.f32.xlu0 %v547
      %v549 = vpop.xlane.xlu0 %548
      %v550 = vsel %vm492, %v487, -inf
      %551 = vmax.xlane.f32.xlu0 %v550
      %v552 = vpop.xlane.xlu0 %551
      %v553 = vsel %vm492, %v488, -inf
      %554 = vmax.xlane.f32.xlu0 %v553
      %v555 = vpop.xlane.xlu0 %554
      %v556 = vsel %vm492, %v489, -inf
      %557 = vmax.xlane.f32.xlu0 %v556
      %v558 = vpop.xlane.xlu0 %557
      %v559 = vsel %vm492, %v490, -inf
      %560 = vmax.xlane.f32.xlu0 %v559
      %v561 = vpop.xlane.xlu0 %560
      %v562 = vsel %vm492, %v491, -inf
      %563 = vmax.xlane.f32.xlu0 %v562
      %v564 = vpop.xlane.xlu0 %563
      %v565 = vlaneseq
      %v566 = vand.u32 %v565, 127
      %v567 = vcvt.s32.f32 %v566
      %vm568 = vcmp.eq.f32.partialorder %v468, %v495
      %vm569 = vcmp.eq.f32.partialorder %v469, %v498
      %vm570 = vcmp.eq.f32.partialorder %v470, %v501
      %vm571 = vcmp.eq.f32.partialorder %v471, %v504
      %vm572 = vcmp.eq.f32.partialorder %v472, %v507
      %vm573 = vcmp.eq.f32.partialorder %v473, %v510
      %vm574 = vcmp.eq.f32.partialorder %v474, %v513
      %vm575 = vcmp.eq.f32.partialorder %v475, %v516
      %vm576 = vcmp.eq.f32.partialorder %v476, %v519
      %vm577 = vcmp.eq.f32.partialorder %v477, %v522
      %vm578 = vcmp.eq.f32.partialorder %v478, %v525
      %vm579 = vcmp.eq.f32.partialorder %v479, %v528
      %vm580 = vcmp.eq.f32.partialorder %v480, %v531
      %vm581 = vcmp.eq.f32.partialorder %v481, %v534
      %vm582 = vcmp.eq.f32.partialorder %v482, %v537
      %vm583 = vcmp.eq.f32.partialorder %v483, %v540
      %vm584 = vcmp.eq.f32.partialorder %v484, %v543
      %vm585 = vcmp.eq.f32.partialorder %v485, %v546
      %vm586 = vcmp.eq.f32.partialorder %v486, %v549
      %vm587 = vcmp.eq.f32.partialorder %v487, %v552
      %vm588 = vcmp.eq.f32.partialorder %v488, %v555
      %vm589 = vcmp.eq.f32.partialorder %v489, %v558
      %vm590 = vcmp.eq.f32.partialorder %v490, %v561
      %vm591 = vcmp.eq.f32.partialorder %v491, %v564
      %593 = vrot.lane.b32.xlu0 %v567, 5
      %v594 = vpop.permute.xlu0 %593
      %v596 = vsel %vm568, %v594, 3e+38
      %v597 = vsel %vm569, %v594, 3e+38
      %v598 = vsel %vm570, %v594, 3e+38
      %v599 = vsel %vm571, %v594, 3e+38
      %v600 = vsel %vm572, %v594, 3e+38
      %v601 = vsel %vm573, %v594, 3e+38
      %v602 = vsel %vm574, %v594, 3e+38
      %v603 = vsel %vm575, %v594, 3e+38
      %v604 = vsel %vm576, %v594, 3e+38
      %v605 = vsel %vm577, %v594, 3e+38
      %v606 = vsel %vm578, %v594, 3e+38
      %v607 = vsel %vm579, %v594, 3e+38
      %v608 = vsel %vm580, %v594, 3e+38
      %v609 = vsel %vm581, %v594, 3e+38
      %v610 = vsel %vm582, %v594, 3e+38
      %v611 = vsel %vm583, %v594, 3e+38
      %v612 = vsel %vm584, %v594, 3e+38
      %v613 = vsel %vm585, %v594, 3e+38
      %v614 = vsel %vm586, %v594, 3e+38
      %v615 = vsel %vm587, %v594, 3e+38
      %v616 = vsel %vm588, %v594, 3e+38
      %v617 = vsel %vm589, %v594, 3e+38
      %v618 = vsel %vm590, %v594, 3e+38
      %v619 = vsel %vm591, %v594, 3e+38
      %v620 = vsel %vm492, %v596, inf
      %621 = vmin.xlane.f32.xlu0 %v620
      %v622 = vpop.xlane.xlu0 %621
      %v623 = vsel %vm492, %v597, inf
      %624 = vmin.xlane.f32.xlu0 %v623
      %v625 = vpop.xlane.xlu0 %624
      %v626 = vsel %vm492, %v598, inf
      %627 = vmin.xlane.f32.xlu0 %v626
      %v628 = vpop.xlane.xlu0 %627
      %v629 = vsel %vm492, %v599, inf
      %630 = vmin.xlane.f32.xlu0 %v629
      %v631 = vpop.xlane.xlu0 %630
      %v632 = vsel %vm492, %v600, inf
      %633 = vmin.xlane.f32.xlu0 %v632
      %v634 = vpop.xlane.xlu0 %633
      %v635 = vsel %vm492, %v601, inf
      %636 = vmin.xlane.f32.xlu0 %v635
      %v637 = vpop.xlane.xlu0 %636
      %v638 = vsel %vm492, %v602, inf
      %639 = vmin.xlane.f32.xlu0 %v638
      %v640 = vpop.xlane.xlu0 %639
      %v641 = vsel %vm492, %v603, inf
      %642 = vmin.xlane.f32.xlu0 %v641
      %v643 = vpop.xlane.xlu0 %642
      %v644 = vsel %vm492, %v604, inf
      %645 = vmin.xlane.f32.xlu0 %v644
      %v646 = vpop.xlane.xlu0 %645
      %v647 = vsel %vm492, %v605, inf
      %648 = vmin.xlane.f32.xlu0 %v647
      %v649 = vpop.xlane.xlu0 %648
      %v650 = vsel %vm492, %v606, inf
      %651 = vmin.xlane.f32.xlu0 %v650
      %v652 = vpop.xlane.xlu0 %651
      %v653 = vsel %vm492, %v607, inf
      %654 = vmin.xlane.f32.xlu0 %v653
      %v655 = vpop.xlane.xlu0 %654
      %v656 = vsel %vm492, %v608, inf
      %657 = vmin.xlane.f32.xlu0 %v656
      %v658 = vpop.xlane.xlu0 %657
      %v659 = vsel %vm492, %v609, inf
      %660 = vmin.xlane.f32.xlu0 %v659
      %v661 = vpop.xlane.xlu0 %660
      %v662 = vsel %vm492, %v610, inf
      %663 = vmin.xlane.f32.xlu0 %v662
      %v664 = vpop.xlane.xlu0 %663
      %v665 = vsel %vm492, %v611, inf
      %666 = vmin.xlane.f32.xlu0 %v665
      %v667 = vpop.xlane.xlu0 %666
      %v668 = vsel %vm492, %v612, inf
      %669 = vmin.xlane.f32.xlu0 %v668
      %v670 = vpop.xlane.xlu0 %669
      %v671 = vsel %vm492, %v613, inf
      %672 = vmin.xlane.f32.xlu0 %v671
      %v673 = vpop.xlane.xlu0 %672
      %v674 = vsel %vm492, %v614, inf
      %675 = vmin.xlane.f32.xlu0 %v674
      %v676 = vpop.xlane.xlu0 %675
      %v677 = vsel %vm492, %v615, inf
      %678 = vmin.xlane.f32.xlu0 %v677
      %v679 = vpop.xlane.xlu0 %678
      %v680 = vsel %vm492, %v616, inf
      %681 = vmin.xlane.f32.xlu0 %v680
      %v682 = vpop.xlane.xlu0 %681
      %v683 = vsel %vm492, %v617, inf
      %684 = vmin.xlane.f32.xlu0 %v683
      %v685 = vpop.xlane.xlu0 %684
      %v686 = vsel %vm492, %v618, inf
      %687 = vmin.xlane.f32.xlu0 %v686
      %v688 = vpop.xlane.xlu0 %687
      %v689 = vsel %vm492, %v619, inf
      %690 = vmin.xlane.f32.xlu0 %v689
      %v691 = vpop.xlane.xlu0 %690
      %716 = vrot.lane.b32.xlu0 %v324, 2
      %v717 = vpop.permute.xlu0 %716
      %718 = vrot.lane.b32.xlu0 %v325, 2
      %v719 = vpop.permute.xlu0 %718
      %720 = vrot.lane.b32.xlu0 %v326, 2
      %v721 = vpop.permute.xlu0 %720
      %722 = vrot.lane.b32.xlu0 %v327, 2
      %v723 = vpop.permute.xlu0 %722
      %724 = vrot.lane.b32.xlu0 %v328, 2
      %v725 = vpop.permute.xlu0 %724
      %726 = vrot.lane.b32.xlu0 %v329, 2
      %v727 = vpop.permute.xlu0 %726
      %728 = vrot.lane.b32.xlu0 %v330, 2
      %v729 = vpop.permute.xlu0 %728
      %730 = vrot.lane.b32.xlu0 %v331, 2
      %v731 = vpop.permute.xlu0 %730
      %732 = vrot.lane.b32.xlu0 %v332, 2
      %v733 = vpop.permute.xlu0 %732
      %734 = vrot.lane.b32.xlu0 %v333, 2
      %v735 = vpop.permute.xlu0 %734
      %736 = vrot.lane.b32.xlu0 %v334, 2
      %v737 = vpop.permute.xlu0 %736
      %738 = vrot.lane.b32.xlu0 %v335, 2
      %v739 = vpop.permute.xlu0 %738
      %740 = vrot.lane.b32.xlu0 %v336, 2
      %v741 = vpop.permute.xlu0 %740
      %742 = vrot.lane.b32.xlu0 %v337, 2
      %v743 = vpop.permute.xlu0 %742
      %744 = vrot.lane.b32.xlu0 %v338, 2
      %v745 = vpop.permute.xlu0 %744
      %746 = vrot.lane.b32.xlu0 %v339, 2
      %v747 = vpop.permute.xlu0 %746
      %748 = vrot.lane.b32.xlu0 %v340, 2
      %v749 = vpop.permute.xlu0 %748
      %750 = vrot.lane.b32.xlu0 %v341, 2
      %v751 = vpop.permute.xlu0 %750
      %752 = vrot.lane.b32.xlu0 %v342, 2
      %v753 = vpop.permute.xlu0 %752
      %754 = vrot.lane.b32.xlu0 %v343, 2
      %v755 = vpop.permute.xlu0 %754
      %756 = vrot.lane.b32.xlu0 %v344, 2
      %v757 = vpop.permute.xlu0 %756
      %758 = vrot.lane.b32.xlu0 %v345, 2
      %v759 = vpop.permute.xlu0 %758
      %760 = vrot.lane.b32.xlu0 %v346, 2
      %v761 = vpop.permute.xlu0 %760
      %762 = vrot.lane.b32.xlu0 %v347, 2
      %v763 = vpop.permute.xlu0 %762
      %vm788 = vcmask 15360
      %v789 = vsel %vm788, %v300, %v717
      %v790 = vsel %vm788, %v301, %v719
      %v791 = vsel %vm788, %v302, %v721
      %v792 = vsel %vm788, %v303, %v723
      %v793 = vsel %vm788, %v304, %v725
      %v794 = vsel %vm788, %v305, %v727
      %v795 = vsel %vm788, %v306, %v729
      %v796 = vsel %vm788, %v307, %v731
      %v797 = vsel %vm788, %v308, %v733
      %v798 = vsel %vm788, %v309, %v735
      %v799 = vsel %vm788, %v310, %v737
      %v800 = vsel %vm788, %v311, %v739
      %v801 = vsel %vm788, %v312, %v741
      %v802 = vsel %vm788, %v313, %v743
      %v803 = vsel %vm788, %v314, %v745
      %v804 = vsel %vm788, %v315, %v747
      %v805 = vsel %vm788, %v316, %v749
      %v806 = vsel %vm788, %v317, %v751
      %v807 = vsel %vm788, %v318, %v753
      %v808 = vsel %vm788, %v319, %v755
      %v809 = vsel %vm788, %v320, %v757
      %v810 = vsel %vm788, %v321, %v759
      %v811 = vsel %vm788, %v322, %v761
      %v812 = vsel %vm788, %v323, %v763
      %vm813 = vcmask 31744
      %v814 = vsel %vm813, %v789, %v495
      %v815 = vsel %vm813, %v790, %v498
      %v816 = vsel %vm813, %v791, %v501
      %v817 = vsel %vm813, %v792, %v504
      %v818 = vsel %vm813, %v793, %v507
      %v819 = vsel %vm813, %v794, %v510
      %v820 = vsel %vm813, %v795, %v513
      %v821 = vsel %vm813, %v796, %v516
      %v822 = vsel %vm813, %v797, %v519
      %v823 = vsel %vm813, %v798, %v522
      %v824 = vsel %vm813, %v799, %v525
      %v825 = vsel %vm813, %v800, %v528
      %v826 = vsel %vm813, %v801, %v531
      %v827 = vsel %vm813, %v802, %v534
      %v828 = vsel %vm813, %v803, %v537
      %v829 = vsel %vm813, %v804, %v540
      %v830 = vsel %vm813, %v805, %v543
      %v831 = vsel %vm813, %v806, %v546
      %v832 = vsel %vm813, %v807, %v549
      %v833 = vsel %vm813, %v808, %v552
      %v834 = vsel %vm813, %v809, %v555
      %v835 = vsel %vm813, %v810, %v558
      %v836 = vsel %vm813, %v811, %v561
      %v837 = vsel %vm813, %v812, %v564
      %vm838 = vcmask 39936
      %v839 = vsel %vm838, %v814, %v622
      %v840 = vsel %vm838, %v815, %v625
      %v841 = vsel %vm838, %v816, %v628
      %v842 = vsel %vm838, %v817, %v631
      %v843 = vsel %vm838, %v818, %v634
      %v844 = vsel %vm838, %v819, %v637
      %v845 = vsel %vm838, %v820, %v640
      %v846 = vsel %vm838, %v821, %v643
      %v847 = vsel %vm838, %v822, %v646
      %v848 = vsel %vm838, %v823, %v649
      %v849 = vsel %vm838, %v824, %v652
      %v850 = vsel %vm838, %v825, %v655
      %v851 = vsel %vm838, %v826, %v658
      %v852 = vsel %vm838, %v827, %v661
      %v853 = vsel %vm838, %v828, %v664
      %v854 = vsel %vm838, %v829, %v667
      %v855 = vsel %vm838, %v830, %v670
      %v856 = vsel %vm838, %v831, %v673
      %v857 = vsel %vm838, %v832, %v676
      %v858 = vsel %vm838, %v833, %v679
      %v859 = vsel %vm838, %v834, %v682
      %v860 = vsel %vm838, %v835, %v685
      %v861 = vsel %vm838, %v836, %v688
      %v862 = vsel %vm838, %v837, %v691
      %vm863 = vcmask 48128
      %864 = vst.msk [vmem:[%s154] sm:$0xff] %vm863, %v839
      %865 = vst.msk [vmem:[%s154 + $0x8] sm:$0xff] %vm863, %v840
      %866 = vst.msk [vmem:[%s154 + $0x10] sm:$0xff] %vm863, %v841
      %867 = vst.msk [vmem:[%s154 + $0x18] sm:$0xff] %vm863, %v842
      %868 = vst.msk [vmem:[%s154 + $0x20] sm:$0xff] %vm863, %v843
      %869 = vst.msk [vmem:[%s154 + $0x28] sm:$0xff] %vm863, %v844
      %870 = vst.msk [vmem:[%s154 + $0x30] sm:$0xff] %vm863, %v845
      %871 = vst.msk [vmem:[%s154 + $0x38] sm:$0xff] %vm863, %v846
      %872 = vst.msk [vmem:[%s154 + $0x40] sm:$0xff] %vm863, %v847
      %873 = vst.msk [vmem:[%s154 + $0x48] sm:$0xff] %vm863, %v848
      %874 = vst.msk [vmem:[%s154 + $0x50] sm:$0xff] %vm863, %v849
      %875 = vst.msk [vmem:[%s154 + $0x58] sm:$0xff] %vm863, %v850
      %876 = vst.msk [vmem:[%s154 + $0x60] sm:$0xff] %vm863, %v851
      %877 = vst.msk [vmem:[%s154 + $0x68] sm:$0xff] %vm863, %v852
      %878 = vst.msk [vmem:[%s154 + $0x70] sm:$0xff] %vm863, %v853
      %879 = vst.msk [vmem:[%s154 + $0x78] sm:$0xff] %vm863, %v854
      %880 = vst.msk [vmem:[%s154 + $0x80] sm:$0xff] %vm863, %v855
      %881 = vst.msk [vmem:[%s154 + $0x88] sm:$0xff] %vm863, %v856
      %882 = vst.msk [vmem:[%s154 + $0x90] sm:$0xff] %vm863, %v857
      %883 = vst.msk [vmem:[%s154 + $0x98] sm:$0xff] %vm863, %v858
      %884 = vst.msk [vmem:[%s154 + $0xa0] sm:$0xff] %vm863, %v859
      %885 = vst.msk [vmem:[%s154 + $0xa8] sm:$0xff] %vm863, %v860
      %886 = vst.msk [vmem:[%s154 + $0xb0] sm:$0xff] %vm863, %v861
      %887 = vst.msk [vmem:[%s154 + $0xb8] sm:$0xff] %vm863, %v862
      %s888 = smul.u32 24, %s17
      %p889 = scmp.lt.s32.totalorder %s16, 1
      %s890 = scalar_select %p889, %s16, 1
      %p891 = scmp.lt.s32.totalorder %s888, 47
      %s892 = scalar_select %p891, %s888, 47
      %s893 = smul.addr %s890, 48
      %s894 = sadd.s32 %s892, %s893
      %s895 = smul.addr %s894, 8
      %s896 = scalar_lea.vmem %s1, %s895
      // Predicated region
      $region25: #{tpu_custom_call.1} parent=23 // pred_check
        %p897 = pneg %p72
      $region26: #{tpu_custom_call.1} parent=23 // pred_check_branch
        %899 = sbr.rel (%p897) target = $region28
      $region27: #{tpu_custom_call.1} parent=23 // pred_region
        %s900 = smul.u32 24, %s17
      $region28: #{tpu_custom_call.1} parent=23 // pred_fallthru
        _
    $region24: #{tpu_custom_call.1} parent=5 // pred_fallthru
      _
    %p901 = scmp.le.s32.totalorder 2, %s7
    // Predicated region
    $region29: #{tpu_custom_call.1} parent=5 // pred_check
      %p902 = pneg %p901
    $region30: #{tpu_custom_call.1} parent=5 // pred_check_branch
      %904 = sbr.rel (%p902) target = $region32
    $region31: #{tpu_custom_call.1} parent=5 // pred_region
      %s905 = ssub.s32 %s7, 2
      // Predicated region
      $region33: #{tpu_custom_call.1} parent=31 // pred_check
        %p906 = pneg %p78
      $region34: #{tpu_custom_call.1} parent=31 // pred_check_branch
        %908 = sbr.rel (%p906) target = $region36
      $region35: #{tpu_custom_call.1} parent=31 // pred_region
        %s909 = smul.u32 24, %s19
        %p910 = scmp.lt.s32.totalorder %s18, 1
        %s911 = scalar_select %p910, %s18, 1
        %p912 = scmp.lt.s32.totalorder %s909, 47
        %s913 = scalar_select %p912, %s909, 47
        %s914 = smul.addr %s911, 48
        %s915 = sadd.s32 %s913, %s914
        %s916 = smul.addr %s915, 8
        %s917 = scalar_lea.vmem %s1, %s916
      $region36: #{tpu_custom_call.1} parent=31 // pred_fallthru
        _
    $region32: #{tpu_custom_call.1} parent=5 // pred_fallthru
      _
  $region6: #{tpu_custom_call.1} parent=0 // loop_footer
    %s11 = sadd.s32 1, %s7
  $region7: #{tpu_custom_call.1} parent=0 // loop_footer_branch
    %6 = sbr.rel target = $region3
  $region8: #{tpu_custom_call.1} parent=0 // loop_exit
    _

</llo_original>
